<compile_context>
chip_gen: v6e
topology: v6e:2x2x1
jax: 0.10.0
libtpu: 0.0.40
codegen_flags: <defaults>
</compile_context>

<pallas_src>
import functools

import jax
import jax.numpy as jnp
from jax.experimental import pallas as pl
from jax.experimental.pallas import tpu as pltpu


def _round_up(x, m):
    return ((x + m - 1) // m) * m


def _cdiv(a, b):
    return -(-a // b)


# ---------------------------------------------------------------------------
# Pallas kernel: fused Linear -> LeakyReLU -> Linear for one (bt, tn) tile.
# ---------------------------------------------------------------------------
def _mlp_kernel(x_ref, w1_ref, b1_ref, w2_ref, b2_ref, o_ref, *,
                in_nc, use_bf16, l1_on_vpu):
    x = x_ref[...]                                           # (bt, in_pad) f32
    if l1_on_vpu:
        # Layer 1 on the VPU: in_nc broadcast multiply-adds accumulated in f32.
        # Keeps the MXU free for the dominant layer-2 dot.
        h = b1_ref[...]                                      # (1, nc_pad)
        for c in range(in_nc):                               # static unroll
            h = h + x[:, c:c + 1] * w1_ref[c:c + 1, :]       # -> (bt, nc_pad)
    else:
        xs = x.astype(w1_ref.dtype) if use_bf16 else x
        h = jnp.dot(xs, w1_ref[...], preferred_element_type=jnp.float32)
        h = h + b1_ref[...]
    # LeakyReLU (torch default negative_slope = 0.01)
    h = jnp.where(h > 0, h, 0.01 * h)
    if use_bf16:
        h = h.astype(jnp.bfloat16)                           # bf16-native MXU
    # Layer 2: dominant matmul for this (bt, tn) output tile, f32 accumulation.
    y = jnp.dot(h, w2_ref[...], preferred_element_type=jnp.float32)
    y = y + b2_ref[...]
    o_ref[...] = y.astype(o_ref.dtype)


def nonlinear_type_bin_forward(inp, params, *, out_nc, num_bins, num_sheets,
                               batch_tile=512, n_tile=512, use_bf16=True,
                               out_dtype=jnp.float32):
    """inp: (B, in_nc) float32. Returns (B, num_sheets, out_nc, num_bins)."""
    w1, b1, w2, b2 = params            # w1: (in_nc, nc), w2: (nc, OUT)
    B, in_nc = inp.shape
    nc = w1.shape[1]
    out_dim = w2.shape[1]
    assert out_dim == out_nc * num_bins * num_sheets

    l1_on_vpu = in_nc <= 16            # tiny contraction -> VPU, not MXU

    # ---- padded, lane/sublane-dense sizes (minimal padding) ----------------
    if l1_on_vpu or not use_bf16:
        in_pad = _round_up(max(in_nc, 8), 8)
    else:
        in_pad = _round_up(max(in_nc, 16), 16)    # bf16 sublane packing
    nc_pad = _round_up(nc, 128)

    # out_dim padded only to a multiple of 128; tn is a divisor of it.
    out_pad = _round_up(out_dim, 128)
    m = out_pad // 128
    d_cap = max(1, min(m, max(n_tile, 128) // 128))
    d = max(dd for dd in range(1, d_cap + 1) if m % dd == 0)
    tn = 128 * d
    nn = m // d

    # Batch tile fitted to the batch (not the batch rounded up to the tile).
    nb_t = _cdiv(B, max(batch_tile, 8))
    if nn * nb_t < 2 and B > 8:
        nb_t = 2                                   # give both v7x TCs work
    bt = _round_up(_cdiv(B, nb_t), 8)
    nb = _cdiv(B, bt)
    b_pad = nb * bt

    # ---- glue: zero-pad (zero rows/cols contribute nothing) ----------------
    x_p = inp
    if (b_pad, in_pad) != (B, in_nc):
        x_p = jnp.pad(inp, ((0, b_pad - B), (0, in_pad - in_nc)))
    w1_p = w1
    if (in_pad, nc_pad) != (in_nc, nc):
        w1_p = jnp.pad(w1, ((0, in_pad - in_nc), (0, nc_pad - nc)))
    b1_p = jnp.pad(b1, (0, nc_pad - nc)).reshape(1, nc_pad)
    w2_p = w2
    if (nc_pad, out_pad) != (nc, out_dim):
        w2_p = jnp.pad(w2, ((0, nc_pad - nc), (0, out_pad - out_dim)))
    b2_p = jnp.pad(b2, (0, out_pad - out_dim)).reshape(1, out_pad)

    if use_bf16:
        w2_p = w2_p.astype(jnp.bfloat16)
        if not l1_on_vpu:
            w1_p = w1_p.astype(jnp.bfloat16)

    # N outer / batch inner: W2 block index is constant across the inner axis,
    # so each W2 N-tile is fetched once and reused for every batch tile.
    grid = (nn, nb)

    kernel = functools.partial(_mlp_kernel, in_nc=in_nc, use_bf16=use_bf16,
                               l1_on_vpu=l1_on_vpu)

    out_bytes = jnp.dtype(out_dtype).itemsize
    w2_bytes = 2 if use_bf16 else 4
    cost = pl.CostEstimate(
        flops=2 * B * (in_nc * nc + nc * out_dim),
        transcendentals=0,
        bytes_accessed=(B * in_nc * 4 + in_nc * nc * 4 + nc * 4
                        + nc * out_dim * w2_bytes + out_dim * 4
                        + B * out_dim * out_bytes),
    )

    # Double-buffered VMEM footprint; only raise the scoped limit when needed
    # (and never above v7x's 64 MiB physical VMEM).
    fp = 2 * (bt * in_pad * 4 + in_pad * nc_pad * 4 + nc_pad * 4
              + nc_pad * tn * w2_bytes + tn * 4 + bt * tn * out_bytes)
    fp += bt * nc_pad * 4 + bt * tn * 4            # h / y intermediates
    cp_kwargs = dict(dimension_semantics=("parallel", "parallel"))
    if fp > (12 << 20):
        cp_kwargs["vmem_limit_bytes"] = int(min(fp * 3 // 2 + (4 << 20),
                                                64 << 20))

    out = pl.pallas_call(
        kernel,
        out_shape=jax.ShapeDtypeStruct((b_pad, out_pad), out_dtype),
        grid_spec=pltpu.PrefetchScalarGridSpec(
            num_scalar_prefetch=0,
            grid=grid,
            in_specs=[
                pl.BlockSpec((bt, in_pad),     lambda j, i: (i, 0)),  # x tile
                pl.BlockSpec((in_pad, nc_pad), lambda j, i: (0, 0)),  # W1 resident
                pl.BlockSpec((1, nc_pad),      lambda j, i: (0, 0)),  # b1 resident
                pl.BlockSpec((nc_pad, tn),     lambda j, i: (0, j)),  # W2 N-tile
                pl.BlockSpec((1, tn),          lambda j, i: (0, j)),  # b2 N-tile
            ],
            out_specs=pl.BlockSpec((bt, tn),   lambda j, i: (i, j)),
        ),
        compiler_params=pltpu.CompilerParams(**cp_kwargs),
        cost_estimate=cost,
    )(x_p, w1_p, b1_p, w2_p, b2_p)

    if b_pad != B or out_pad != out_dim:
        out = out[:B, :out_dim]
    # .view(-1, num_sheets, out_nc, num_bins): pure glue outside the kernel.
    return out.reshape(-1, num_sheets, out_nc, num_bins)


# ---------------------------------------------------------------------------
# Deterministic parameter init (mimics torch.nn.Linear default: U(-k, k),
# k = 1/sqrt(fan_in)).  Weights stored transposed: (fan_in, fan_out).
# ---------------------------------------------------------------------------
def init_params(key, in_nc, nc, out_dim):
    k1, k2, k3, k4 = jax.random.split(key, 4)
    lim1 = 1.0 / jnp.sqrt(in_nc)
    lim2 = 1.0 / jnp.sqrt(nc)
    w1 = jax.random.uniform(k1, (in_nc, nc), jnp.float32, -lim1, lim1)
    b1 = jax.random.uniform(k2, (nc,),       jnp.float32, -lim1, lim1)
    w2 = jax.random.uniform(k3, (nc, out_dim), jnp.float32, -lim2, lim2)
    b2 = jax.random.uniform(k4, (out_dim,),    jnp.float32, -lim2, lim2)
    return w1, b1, w2, b2


def reference_forward(inp, params, *, out_nc, num_bins, num_sheets):
    w1, b1, w2, b2 = params
    h = inp @ w1 + b1
    h = jnp.where(h > 0, h, 0.01 * h)
    y = h @ w2 + b2
    return y.reshape(-1, num_sheets, out_nc, num_bins)


if __name__ == "__main__":
    key = jax.random.PRNGKey(0)
    # Small shapes consistent with the module (module defaults are
    # in_nc=3, nc=1600, out_nc=18, num_bins=26, num_sheets=4).
    in_nc, nc = 3, 256
    out_nc, num_bins, num_sheets = 18, 26, 4
    out_dim = out_nc * num_bins * num_sheets          # 1872 (pads to 1920)
    B = 300

    kx, kp = jax.random.split(key)
    inp = jax.random.normal(kx, (B, in_nc), jnp.float32)
    params = init_params(kp, in_nc, nc, out_dim)
    ref = reference_forward(inp, params, out_nc=out_nc, num_bins=num_bins,
                            num_sheets=num_sheets)

    # 1) f32 path, small tiles: full 2-D grid (5 N-tiles x 3 batch-tiles).
    out_f32 = jax.block_until_ready(nonlinear_type_bin_forward(
        inp, params, out_nc=out_nc, num_bins=num_bins, num_sheets=num_sheets,
        batch_tile=128, n_tile=384, use_bf16=False))
    assert out_f32.shape == (B, num_sheets, out_nc, num_bins), out_f32.shape
    assert jnp.allclose(out_f32, ref, atol=2e-4, rtol=2e-4), "mismatch (f32 path)"

    # 2) default bf16-compute path, production tiles (looser tolerance vs f32 ref).
    out_bf = jax.block_until_ready(nonlinear_type_bin_forward(
        inp, params, out_nc=out_nc, num_bins=num_bins, num_sheets=num_sheets))
    assert out_bf.shape == (B, num_sheets, out_nc, num_bins), out_bf.shape
    assert jnp.allclose(out_bf, ref, atol=2e-2, rtol=2e-2), "mismatch (bf16 path)"

    # 3) tiny out_dim + tiny batch: exercises the forced >=2-grid-step split
    #    (nn == 1 -> batch axis is split so both v7x TCs would get work).
    out_nc2, num_bins2, num_sheets2 = 6, 10, 4
    out_dim2 = out_nc2 * num_bins2 * num_sheets2      # 240 (pads to 256)
    B2 = 20
    kx2, kp2 = jax.random.split(jax.random.PRNGKey(1))
    inp2 = jax.random.normal(kx2, (B2, in_nc), jnp.float32)
    params2 = init_params(kp2, in_nc, nc, out_dim2)
    ref2 = reference_forward(inp2, params2, out_nc=out_nc2, num_bins=num_bins2,
                             num_sheets=num_sheets2)
    out2 = jax.block_until_ready(nonlinear_type_bin_forward(
        inp2, params2, out_nc=out_nc2, num_bins=num_bins2,
        num_sheets=num_sheets2))
    assert out2.shape == (B2, num_sheets2, out_nc2, num_bins2), out2.shape
    assert jnp.allclose(out2, ref2, atol=2e-2, rtol=2e-2), "mismatch (small out_dim)"

    print("KERNEL_OK")
</pallas_src>

<mosaic_0001>
module attributes {stable_mosaic.version = 11 : i64} {
  func.func @_mlp_kernel(%arg0: i32, %arg1: i32, %arg2: memref<104x8xf32, #tpu.memory_space<vmem>>, %arg3: memref<8x256xf32, #tpu.memory_space<vmem>>, %arg4: memref<1x256xf32, #tpu.memory_space<vmem>>, %arg5: memref<256x384xf32, #tpu.memory_space<vmem>>, %arg6: memref<1x384xf32, #tpu.memory_space<vmem>>, %arg7: memref<104x384xf32, #tpu.memory_space<vmem>>) attributes {dimension_semantics = [#tpu.dimension_semantics<parallel>, #tpu.dimension_semantics<parallel>], iteration_bounds = array<i64: 5, 3>, scalar_prefetch = 0 : i64, scratch_operands = 0 : i64, tpu.core_type = #tpu.core_type<tc>, window_params = [{transform_indices = @transform_0, window_bounds = array<i64: 104, 8>}, {pipeline_mode = #tpu.pipeline_mode<synchronous>, transform_indices = @transform_1, window_bounds = array<i64: 8, 256>}, {pipeline_mode = #tpu.pipeline_mode<synchronous>, transform_indices = @transform_2, window_bounds = array<i64: 1, 256>}, {transform_indices = @transform_3, window_bounds = array<i64: 256, 384>}, {transform_indices = @transform_4, window_bounds = array<i64: 1, 384>}, {transform_indices = @transform_5, window_bounds = array<i64: 104, 384>}]} {
    %c0 = arith.constant 0 : index
    %c0_0 = arith.constant 0 : index
    %0 = vector.load %arg2[%c0, %c0_0] : memref<104x8xf32, #tpu.memory_space<vmem>>, vector<104x8xf32>
    %c0_1 = arith.constant 0 : index
    %c0_2 = arith.constant 0 : index
    %1 = vector.load %arg4[%c0_1, %c0_2] : memref<1x256xf32, #tpu.memory_space<vmem>>, vector<1x256xf32>
    %2 = vector.extract_strided_slice %0 {offsets = [0, 0], sizes = [104, 1], strides = [1, 1]} : vector<104x8xf32> to vector<104x1xf32>
    %c0_3 = arith.constant 0 : index
    %c0_4 = arith.constant 0 : index
    %3 = vector.load %arg3[%c0_3, %c0_4] : memref<8x256xf32, #tpu.memory_space<vmem>>, vector<1x256xf32>
    %4 = vector.broadcast %2 : vector<104x1xf32> to vector<104x256xf32>
    %5 = vector.broadcast %3 : vector<1x256xf32> to vector<104x256xf32>
    %6 = arith.mulf %4, %5 : vector<104x256xf32>
    %7 = vector.broadcast %1 : vector<1x256xf32> to vector<104x256xf32>
    %8 = arith.addf %7, %6 : vector<104x256xf32>
    %9 = vector.extract_strided_slice %0 {offsets = [0, 1], sizes = [104, 1], strides = [1, 1]} : vector<104x8xf32> to vector<104x1xf32>
    %c1 = arith.constant 1 : index
    %c0_5 = arith.constant 0 : index
    %10 = vector.load %arg3[%c1, %c0_5] : memref<8x256xf32, #tpu.memory_space<vmem>>, vector<1x256xf32>
    %11 = vector.broadcast %9 : vector<104x1xf32> to vector<104x256xf32>
    %12 = vector.broadcast %10 : vector<1x256xf32> to vector<104x256xf32>
    %13 = arith.mulf %11, %12 : vector<104x256xf32>
    %14 = arith.addf %8, %13 : vector<104x256xf32>
    %15 = vector.extract_strided_slice %0 {offsets = [0, 2], sizes = [104, 1], strides = [1, 1]} : vector<104x8xf32> to vector<104x1xf32>
    %c2 = arith.constant 2 : index
    %c0_6 = arith.constant 0 : index
    %16 = vector.load %arg3[%c2, %c0_6] : memref<8x256xf32, #tpu.memory_space<vmem>>, vector<1x256xf32>
    %17 = vector.broadcast %15 : vector<104x1xf32> to vector<104x256xf32>
    %18 = vector.broadcast %16 : vector<1x256xf32> to vector<104x256xf32>
    %19 = arith.mulf %17, %18 : vector<104x256xf32>
    %20 = arith.addf %14, %19 : vector<104x256xf32>
    %cst = arith.constant 0.000000e+00 : f32
    %21 = vector.broadcast %cst : f32 to vector<104x256xf32>
    %22 = arith.cmpf ogt, %20, %21 : vector<104x256xf32>
    %cst_7 = arith.constant 0.00999999977 : f32
    %23 = vector.broadcast %cst_7 : f32 to vector<104x256xf32>
    %24 = arith.mulf %23, %20 : vector<104x256xf32>
    %25 = arith.select %22, %20, %24 : vector<104x256xi1>, vector<104x256xf32>
    %c0_8 = arith.constant 0 : index
    %c0_9 = arith.constant 0 : index
    %26 = vector.load %arg5[%c0_8, %c0_9] : memref<256x384xf32, #tpu.memory_space<vmem>>, vector<256x384xf32>
    %cst_10 = arith.constant dense<0.000000e+00> : vector<104x384xf32>
    %27 = tpu.matmul %25, %26, %cst_10 {dimension_numbers = #tpu.dot_dimension_numbers<[1], [0], [0], [1], [0, 0, 1, 1], [], []>} : vector<104x256xf32>, vector<256x384xf32>, vector<104x384xf32> -> vector<104x384xf32>
    %c0_11 = arith.constant 0 : index
    %c0_12 = arith.constant 0 : index
    %28 = vector.load %arg6[%c0_11, %c0_12] : memref<1x384xf32, #tpu.memory_space<vmem>>, vector<1x384xf32>
    %29 = vector.broadcast %28 : vector<1x384xf32> to vector<104x384xf32>
    %30 = arith.addf %27, %29 : vector<104x384xf32>
    %c0_13 = arith.constant 0 : index
    %c0_14 = arith.constant 0 : index
    %31 = vector.load %arg7[%c0_13, %c0_14] : memref<104x384xf32, #tpu.memory_space<vmem>>, vector<104x384xf32>
    tpu.vector_store %arg7[%c0_13, %c0_14], %30 {strides = array<i32>} : memref<104x384xf32, #tpu.memory_space<vmem>>, vector<104x384xf32>,
    return
  }
  func.func @transform_0(%arg0: i32, %arg1: i32) -> (i32, i32) {
    %c0_i32 = arith.constant 0 : i32
    %c0_i32_0 = arith.constant 0 : i32
    return %arg1, %c0_i32 : i32, i32
  }
  func.func @transform_1(%arg0: i32, %arg1: i32) -> (i32, i32) {
    %c0_i32 = arith.constant 0 : i32
    %c0_i32_0 = arith.constant 0 : i32
    %c0_i32_1 = arith.constant 0 : i32
    return %c0_i32, %c0_i32_0 : i32, i32
  }
  func.func @transform_2(%arg0: i32, %arg1: i32) -> (i32, i32) {
    %c0_i32 = arith.constant 0 : i32
    %c0_i32_0 = arith.constant 0 : i32
    %c0_i32_1 = arith.constant 0 : i32
    return %c0_i32, %c0_i32_0 : i32, i32
  }
  func.func @transform_3(%arg0: i32, %arg1: i32) -> (i32, i32) {
    %c0_i32 = arith.constant 0 : i32
    %c0_i32_0 = arith.constant 0 : i32
    return %c0_i32, %arg0 : i32, i32
  }
  func.func @transform_4(%arg0: i32, %arg1: i32) -> (i32, i32) {
    %c0_i32 = arith.constant 0 : i32
    %c0_i32_0 = arith.constant 0 : i32
    return %c0_i32, %arg0 : i32, i32
  }
  func.func @transform_5(%arg0: i32, %arg1: i32) -> (i32, i32) {
    %c0_i32 = arith.constant 0 : i32
    return %arg1, %arg0 : i32, i32
  }
}

</mosaic_0001>

<llo_original>
// kernel: tpu_custom_call.1
$region0: #{tpu_custom_call.1}
  #allocation0 [shape = 'u32[]', space=smem, size = 0x4, offset = 0x4, fixed_abs, tag = 'smem constant byte address 0x4 - core index']
  #allocation1 [shape = 'u32[144,128]{1,0:T(1,128)}', space=vmem, size = 0x12000, scoped, tag = 'internal scratch']
  %s0 = inlined_call_operand.vmem [shape: f32[312,8], index: 0, kind: input, shape index: {}]
  %s1 = inlined_call_operand.hbm [shape: f32[8,256], index: 1, kind: input, shape index: {}]
  %s2 = inlined_call_operand.hbm [shape: f32[1,256], index: 2, kind: input, shape index: {}]
  %s3 = inlined_call_operand.hbm [shape: f32[256,1920], index: 3, kind: input, shape index: {}]
  %s4 = inlined_call_operand.hbm [shape: f32[1,1920], index: 4, kind: input, shape index: {}]
  %s5 = inlined_call_operand.hbm [shape: f32[312,1920], index: 5, kind: output, shape index: {}]
  %s6 = sld [smem:[#allocation0]]
  $region69: #{tpu_custom_call.1} parent=0
    _
  %s8 = ssub.s32 1, %s6
  %s9 = scalar_select 0, %s8, %s6
  $region1: #{tpu_custom_call.1} parent=0
    #allocation2 [shape = 'u8[8192]{0}', space=vmem, size = 0x2000, scoped, tag = 'input window, operand 1, single buffered']
    #allocation3 [shape = 's32[2]{0}', space=sflag, size = 0x8, scoped, tag = 'scoped memory for tpu_custom_call.1']
    #allocation4 [shape = 's32[2]{0}', space=sflag, size = 0x8, scoped, tag = 'scoped memory for tpu_custom_call.1']
    #allocation5 [shape = 'u8[1024]{0}', space=vmem, size = 0x400, scoped, tag = 'input window, operand 2, single buffered']
    #allocation6 [shape = 's32[1]{0}', space=sflag, size = 0x4, scoped, tag = 'scoped memory for tpu_custom_call.1']
    #allocation7 [shape = 'u8[786432]{0}', space=vmem, size = 0xc0000, scoped, tag = 'input window, operand 3']
    #allocation8 [shape = 'u8[3072]{0}', space=vmem, size = 0xc00, scoped, tag = 'input window, operand 4']
    #allocation9 [shape = 'u8[319488]{0}', space=vmem, size = 0x4e000, scoped, tag = 'output window, operand 0']
    %10 = vsyncpa [#allocation3], 0
    %11 = vsyncpa [#allocation6], 0
    %12 = vsyncpa [#allocation4], 0
    %s13 = scalar_lea.sflag [#allocation4], 1
    %14 = vsyncpa %s13, 0
    loop: start=0, step=1, limit=17
    $region2: #{tpu_custom_call.1} parent=1 // loop_pre_header
      _
    $region3: #{tpu_custom_call.1} parent=1 // loop_header
      %s16 = sphi 0, %s20
      %p17 = scmp.ge.s32.totalorder %s16, 17
      %s23 = sphi 0, %s35
      %s24 = sphi 0, %s31
      %s25 = sphi 0, %s23
      %s26 = sphi 0, %s24
      %s27 = sphi 0, %s25
      %s28 = sphi 0, %s26
      %s38 = sphi 0, %s40
      %s41 = sphi 0, %s38
      %s42 = sphi 0, %s41
      %s58 = sphi 0, %s42
      %s62 = sphi 0, %s62
      %s64 = sphi 0, %s62
      %s65 = sphi 0, %s64
      %s79 = sphi 0, %s65
      %s83 = sphi 0, %s83
      %s85 = sphi 0, %s83
      %s86 = sphi 0, %s85
      %s100 = sphi 0, %s86
      %s106 = sphi 0, %s108
      %s109 = sphi 0, %s106
      %s110 = sphi 0, %s109
      %s126 = sphi 0, %s110
      %s132 = sphi 0, %s134
      %s135 = sphi 0, %s132
      %s136 = sphi 0, %s135
      %s152 = sphi 0, %s136
      %s160 = sphi 0, %s162
      %s163 = sphi 0, %s160
      %s164 = sphi 0, %s163
      %s180 = sphi 0, %s164
    $region4: #{tpu_custom_call.1} parent=1 // loop_header_branch
      %19 = sbr.rel (%p17) target = $region8
    $region5: #{tpu_custom_call.1} parent=1 // loop_body
      %s21 = ssub.s32 %s16, 1
      %s22 = ssub.s32 %s16, 2
      %s29 = sadd.s32 1, %s24
      %p30 = scmp.ge.s32.totalorder %s29, 3
      %s31 = scalar_select %p30, 0, %s29
      %s32 = sadd.s32 1, %s23
      %s33 = scalar_select %p30, %s32, %s23
      %p34 = scmp.ge.s32.totalorder %s33, 5
      %s35 = scalar_select %p34, 0, %s33
      %s36 = ssub.s32 %s24, %s31
      %p37 = scmp.eq.s32.totalorder %s36, 0
      %s39 = sadd.s32 %s38, 1
      %s40 = scalar_select %p37, %s38, %s39
      %p43 = pneg %p37
      %p44 = scmp.eq.s32.totalorder %s16, 14
      %p45 = por %p43, %p44
      %p46 = scmp.ne.s32.totalorder %s38, %s41
      %p47 = scmp.eq.s32.totalorder %s16, 0
      %p48 = por %p46, %p47
      %p49 = scmp.ne.s32.totalorder %s38, %s41
      %p50 = scmp.eq.s32.totalorder %s21, 14
      %p51 = por %p49, %p50
      %p52 = scmp.ne.s32.totalorder %s41, %s42
      %p53 = scmp.eq.s32.totalorder %s21, 0
      %p54 = por %p52, %p53
      %p55 = scmp.ne.s32.totalorder %s41, %s42
      %p56 = scmp.eq.s32.totalorder %s22, 14
      %p57 = por %p55, %p56
      %p59 = scmp.ne.s32.totalorder %s42, %s58
      %p60 = scmp.eq.s32.totalorder %s22, 0
      %p61 = por %p59, %p60
      %s63 = sadd.s32 %s62, 1
      %p66 = scmp.eq.s32.totalorder %s16, 14
      %p67 = scmp.ne.s32.totalorder %s62, %s64
      %p68 = scmp.eq.s32.totalorder %s16, 0
      %p69 = por %p67, %p68
      %p70 = scmp.ne.s32.totalorder %s62, %s64
      %p71 = scmp.eq.s32.totalorder %s21, 14
      %p72 = por %p70, %p71
      %p73 = scmp.ne.s32.totalorder %s64, %s65
      %p74 = scmp.eq.s32.totalorder %s21, 0
      %p75 = por %p73, %p74
      %p76 = scmp.ne.s32.totalorder %s64, %s65
      %p77 = scmp.eq.s32.totalorder %s22, 14
      %p78 = por %p76, %p77
      %p80 = scmp.ne.s32.totalorder %s65, %s79
      %p81 = scmp.eq.s32.totalorder %s22, 0
      %p82 = por %p80, %p81
      %s84 = sadd.s32 %s83, 1
      %p87 = scmp.eq.s32.totalorder %s16, 14
      %p88 = scmp.ne.s32.totalorder %s83, %s85
      %p89 = scmp.eq.s32.totalorder %s16, 0
      %p90 = por %p88, %p89
      %p91 = scmp.ne.s32.totalorder %s83, %s85
      %p92 = scmp.eq.s32.totalorder %s21, 14
      %p93 = por %p91, %p92
      %p94 = scmp.ne.s32.totalorder %s85, %s86
      %p95 = scmp.eq.s32.totalorder %s21, 0
      %p96 = por %p94, %p95
      %p97 = scmp.ne.s32.totalorder %s85, %s86
      %p98 = scmp.eq.s32.totalorder %s22, 14
      %p99 = por %p97, %p98
      %p101 = scmp.ne.s32.totalorder %s86, %s100
      %p102 = scmp.eq.s32.totalorder %s22, 0
      %p103 = por %p101, %p102
      %s104 = ssub.s32 %s23, %s35
      %p105 = scmp.eq.s32.totalorder %s104, 0
      %s107 = sadd.s32 %s106, 1
      %s108 = scalar_select %p105, %s106, %s107
      %p111 = pneg %p105
      %p112 = scmp.eq.s32.totalorder %s16, 14
      %p113 = por %p111, %p112
      %p114 = scmp.ne.s32.totalorder %s106, %s109
      %p115 = scmp.eq.s32.totalorder %s16, 0
      %p116 = por %p114, %p115
      %p117 = scmp.ne.s32.totalorder %s106, %s109
      %p118 = scmp.eq.s32.totalorder %s21, 14
      %p119 = por %p117, %p118
      %p120 = scmp.ne.s32.totalorder %s109, %s110
      %p121 = scmp.eq.s32.totalorder %s21, 0
      %p122 = por %p120, %p121
      %p123 = scmp.ne.s32.totalorder %s109, %s110
      %p124 = scmp.eq.s32.totalorder %s22, 14
      %p125 = por %p123, %p124
      %p127 = scmp.ne.s32.totalorder %s110, %s126
      %p128 = scmp.eq.s32.totalorder %s22, 0
      %p129 = por %p127, %p128
      %s130 = ssub.s32 %s23, %s35
      %p131 = scmp.eq.s32.totalorder %s130, 0
      %s133 = sadd.s32 %s132, 1
      %s134 = scalar_select %p131, %s132, %s133
      %p137 = pneg %p131
      %p138 = scmp.eq.s32.totalorder %s16, 14
      %p139 = por %p137, %p138
      %p140 = scmp.ne.s32.totalorder %s132, %s135
      %p141 = scmp.eq.s32.totalorder %s16, 0
      %p142 = por %p140, %p141
      %p143 = scmp.ne.s32.totalorder %s132, %s135
      %p144 = scmp.eq.s32.totalorder %s21, 14
      %p145 = por %p143, %p144
      %p146 = scmp.ne.s32.totalorder %s135, %s136
      %p147 = scmp.eq.s32.totalorder %s21, 0
      %p148 = por %p146, %p147
      %p149 = scmp.ne.s32.totalorder %s135, %s136
      %p150 = scmp.eq.s32.totalorder %s22, 14
      %p151 = por %p149, %p150
      %p153 = scmp.ne.s32.totalorder %s136, %s152
      %p154 = scmp.eq.s32.totalorder %s22, 0
      %p155 = por %p153, %p154
      %s156 = ssub.s32 %s24, %s31
      %s157 = ssub.s32 %s23, %s35
      %s158 = sor.u32 %s156, %s157
      %p159 = scmp.eq.s32.totalorder %s158, 0
      %s161 = sadd.s32 %s160, 1
      %s162 = scalar_select %p159, %s160, %s161
      %p165 = pneg %p159
      %p166 = scmp.eq.s32.totalorder %s16, 14
      %p167 = por %p165, %p166
      %p168 = scmp.ne.s32.totalorder %s160, %s163
      %p169 = scmp.eq.s32.totalorder %s16, 0
      %p170 = por %p168, %p169
      %p171 = scmp.ne.s32.totalorder %s160, %s163
      %p172 = scmp.eq.s32.totalorder %s21, 14
      %p173 = por %p171, %p172
      %p174 = scmp.ne.s32.totalorder %s163, %s164
      %p175 = scmp.eq.s32.totalorder %s21, 0
      %p176 = por %p174, %p175
      %p177 = scmp.ne.s32.totalorder %s163, %s164
      %p178 = scmp.eq.s32.totalorder %s22, 14
      %p179 = por %p177, %p178
      %p181 = scmp.ne.s32.totalorder %s164, %s180
      %p182 = scmp.eq.s32.totalorder %s22, 0
      %p183 = por %p181, %p182
      %p184 = scmp.le.s32.totalorder 1, %s16
      %p185 = scmp.lt.s32.totalorder %s16, 16
      %p186 = pnand %p184, %p185
      %p187 = pneg %p186
      // Predicated region
      $region9: #{tpu_custom_call.1} parent=5 // pred_check
        _
      $region10: #{tpu_custom_call.1} parent=5 // pred_check_branch
        %189 = sbr.rel (%p186) target = $region12
      $region11: #{tpu_custom_call.1} parent=5 // pred_region
        %s190 = ssub.s32 %s16, 1
        // Predicated region
        $region13: #{tpu_custom_call.1} parent=11 // pred_check
          %p191 = pneg %p75
        $region14: #{tpu_custom_call.1} parent=11 // pred_check_branch
          %193 = sbr.rel (%p191) target = $region16
        $region15: #{tpu_custom_call.1} parent=11 // pred_region
          %s195 = ssub.s32 256, 256
          %196 = vsyncadd [#allocation3], %s195
          %s198 = sshll.u32 [#allocation2], 4
          %s199 = int_to_ptr.vmem [resolvable:$true] %s198
          %201 = dma.hbm_to_vmem [thread:$0]  %s1, 256, %s199, [#allocation3]
        $region16: #{tpu_custom_call.1} parent=11 // pred_fallthru
          _
        // Predicated region
        $region17: #{tpu_custom_call.1} parent=11 // pred_check
          %p202 = pneg %p96
        $region18: #{tpu_custom_call.1} parent=11 // pred_check_branch
          %204 = sbr.rel (%p202) target = $region20
        $region19: #{tpu_custom_call.1} parent=11 // pred_region
          %s206 = ssub.s32 32, 32
          %207 = vsyncadd [#allocation6], %s206
          %s209 = sshll.u32 [#allocation5], 4
          %s210 = int_to_ptr.vmem [resolvable:$true] %s209
          %212 = dma.hbm_to_vmem [thread:$0]  %s2, 32, %s210, [#allocation6]
        $region20: #{tpu_custom_call.1} parent=11 // pred_fallthru
          _
      $region12: #{tpu_custom_call.1} parent=5 // pred_fallthru
        _
      %p213 = scmp.lt.s32.totalorder %s16, 15
      // Predicated region
      $region21: #{tpu_custom_call.1} parent=5 // pred_check
        %p214 = pneg %p213
      $region22: #{tpu_custom_call.1} parent=5 // pred_check_branch
        %216 = sbr.rel (%p214) target = $region24
      $region23: #{tpu_custom_call.1} parent=5 // pred_region
        // Predicated region
        $region25: #{tpu_custom_call.1} parent=23 // pred_check
          %p217 = pneg %p48
        $region26: #{tpu_custom_call.1} parent=23 // pred_check_branch
          %219 = sbr.rel (%p217) target = $region28
        $region27: #{tpu_custom_call.1} parent=23 // pred_region
          %s220 = smul.u32 13, %s24
          %p221 = scmp.lt.s32.totalorder %s220, 38
          %s222 = scalar_select %p221, %s220, 38
          %s223 = smul.addr %s222, 8
          %s224 = scalar_lea.vmem %s0, %s223
          %s225 = smul.u32 13, %s24
        $region28: #{tpu_custom_call.1} parent=23 // pred_fallthru
          _
        // Predicated region
        $region29: #{tpu_custom_call.1} parent=23 // pred_check
          %p226 = pneg %p116
        $region30: #{tpu_custom_call.1} parent=23 // pred_check_branch
          %228 = sbr.rel (%p226) target = $region32
        $region31: #{tpu_custom_call.1} parent=23 // pred_region
          %s229 = sand.u32 %s16, 1
          %s230 = scalar_lea.sflag [#allocation3], %s229
          %s231 = sand.u32 %s106, 1
          %s232 = smul.addr %s231, 768
          %s233 = scalar_lea.vmem [#allocation7], %s232
          %s234 = smul.u32 3, %s23
          %s236 = ssub.s32 12288, 12288
          %237 = vsyncadd %s230, %s236
          %s238 = smul.addr %s234, 128
          %s239 = scalar_lea.hbm %s3, %s238
          %s240 = sshll.u32 %s233, 4
          %s241 = int_to_ptr.vmem [resolvable:$true] %s240
          %246 = dma.hbm_to_vmem [thread:$0]  %s239, 12288, %s241, %s230, 1920, 384, 24
        $region32: #{tpu_custom_call.1} parent=23 // pred_fallthru
          _
        // Predicated region
        $region33: #{tpu_custom_call.1} parent=23 // pred_check
          %p247 = pneg %p142
        $region34: #{tpu_custom_call.1} parent=23 // pred_check_branch
          %249 = sbr.rel (%p247) target = $region36
        $region35: #{tpu_custom_call.1} parent=23 // pred_region
          %s250 = sand.u32 %s16, 1
          %s251 = scalar_lea.sflag [#allocation3], %s250
          %s252 = sand.u32 %s132, 1
          %s253 = smul.addr %s252, 3
          %s254 = scalar_lea.vmem [#allocation8], %s253
          %s255 = smul.u32 3, %s23
          %s257 = ssub.s32 48, 48
          %258 = vsyncadd %s251, %s257
          %s259 = smul.addr %s255, 16
          %s260 = scalar_lea.hbm %s4, %s259
          %s262 = sshll.u32 %s254, 4
          %s263 = int_to_ptr.vmem [resolvable:$true] %s262
          %265 = dma.hbm_to_vmem [thread:$0]  %s260, 48, %s263, %s251
        $region36: #{tpu_custom_call.1} parent=23 // pred_fallthru
          _
      $region24: #{tpu_custom_call.1} parent=5 // pred_fallthru
        _
      %p266 = scmp.le.s32.totalorder 1, %s16
      %p267 = scmp.lt.s32.totalorder %s16, 16
      %p268 = pnand %p266, %p267
      %p269 = pneg %p268
      // Predicated region
      $region37: #{tpu_custom_call.1} parent=5 // pred_check
        _
      $region38: #{tpu_custom_call.1} parent=5 // pred_check_branch
        %271 = sbr.rel (%p268) target = $region40
      $region39: #{tpu_custom_call.1} parent=5 // pred_region
        %s272 = ssub.s32 %s16, 1
        // Predicated region
        $region41: #{tpu_custom_call.1} parent=39 // pred_check
          %p273 = pneg %p75
        $region42: #{tpu_custom_call.1} parent=39 // pred_check_branch
          %275 = sbr.rel (%p273) target = $region44
        $region43: #{tpu_custom_call.1} parent=39 // pred_region
          %276 = dma.done [#allocation3], 256
        $region44: #{tpu_custom_call.1} parent=39 // pred_fallthru
          _
        // Predicated region
        $region45: #{tpu_custom_call.1} parent=39 // pred_check
          %p277 = pneg %p96
        $region46: #{tpu_custom_call.1} parent=39 // pred_check_branch
          %279 = sbr.rel (%p277) target = $region48
        $region47: #{tpu_custom_call.1} parent=39 // pred_region
          %280 = dma.done [#allocation6], 32
        $region48: #{tpu_custom_call.1} parent=39 // pred_fallthru
          _
        %s281 = sand.u32 %s21, 1
        %s282 = scalar_lea.sflag [#allocation3], %s281
        %s283 = sand.u32 %s109, 1
        %s284 = smul.addr %s283, 768
        %s285 = scalar_lea.vmem [#allocation7], %s284
        // Predicated region
        $region49: #{tpu_custom_call.1} parent=39 // pred_check
          %p286 = pneg %p122
        $region50: #{tpu_custom_call.1} parent=39 // pred_check_branch
          %288 = sbr.rel (%p286) target = $region52
        $region51: #{tpu_custom_call.1} parent=39 // pred_region
          %289 = dma.done %s282, 12288
        $region52: #{tpu_custom_call.1} parent=39 // pred_fallthru
          _
        %s290 = sand.u32 %s21, 1
        %s291 = scalar_lea.sflag [#allocation3], %s290
        %s292 = sand.u32 %s135, 1
        %s293 = smul.addr %s292, 3
        %s294 = scalar_lea.vmem [#allocation8], %s293
        // Predicated region
        $region53: #{tpu_custom_call.1} parent=39 // pred_check
          %p295 = pneg %p148
        $region54: #{tpu_custom_call.1} parent=39 // pred_check_branch
          %297 = sbr.rel (%p295) target = $region56
        $region55: #{tpu_custom_call.1} parent=39 // pred_region
          %298 = dma.done %s291, 48
        $region56: #{tpu_custom_call.1} parent=39 // pred_fallthru
          _
        %s299 = smul.u32 13, %s26
        %p300 = scmp.lt.s32.totalorder %s299, 38
        %s301 = scalar_select %p300, %s299, 38
        %s302 = smul.addr %s301, 8
        %s303 = scalar_lea.vmem %s0, %s302
        %p304 = pneg %p54
        %p305 = pneg %p51
        %p306 = pneg %p75
        %p307 = pneg %p72
        %p308 = pneg %p96
        %p309 = pneg %p93
        %s310 = sand.u32 %s21, 1
        %s311 = scalar_lea.sflag [#allocation3], %s310
        %s312 = sand.u32 %s109, 1
        %s313 = smul.addr %s312, 768
        %s314 = scalar_lea.vmem [#allocation7], %s313
        %p315 = pneg %p122
        %p316 = pneg %p119
        %s317 = sand.u32 %s21, 1
        %s318 = scalar_lea.sflag [#allocation3], %s317
        %s319 = sand.u32 %s135, 1
        %s320 = smul.addr %s319, 3
        %s321 = scalar_lea.vmem [#allocation8], %s320
        %p322 = pneg %p148
        %p323 = pneg %p145
        %p324 = pneg %p176
        %p325 = pneg %p173
        %s326 = sand.u32 %s163, 1
        %s327 = scalar_lea.sflag [#allocation4], %s326
        %s328 = sand.u32 %s163, 1
        %s329 = smul.addr %s328, 312
        %s330 = scalar_lea.vmem [#allocation9], %s329
        %s331 = smul.u32 13, %s26
        %p332 = scmp.lt.s32.totalorder %s331, 38
        %s333 = scalar_select %p332, %s331, 38
        %s334 = smul.addr %s333, 8
        %s335 = scalar_lea.vmem %s0, %s334
        %s336 = smul.u32 13, %s26
        %s337 = smul.u32 3, %s25
        %s338 = smul.u32 3, %s25
        %s339 = smul.u32 13, %s26
        %s340 = smul.u32 3, %s25
        %v341 = vld [vmem:[%s335] sm:$0xff]
        %v342 = vld [vmem:[%s335 + $0x8] sm:$0xff]
        %v343 = vld [vmem:[%s335 + $0x10] sm:$0xff]
        %v344 = vld [vmem:[%s335 + $0x18] sm:$0xff]
        %v345 = vld [vmem:[%s335 + $0x20] sm:$0xff]
        %v346 = vld [vmem:[%s335 + $0x28] sm:$0xff]
        %v347 = vld [vmem:[%s335 + $0x30] sm:$0xff]
        %v348 = vld [vmem:[%s335 + $0x38] sm:$0xff]
        %v349 = vld [vmem:[%s335 + $0x40] sm:$0xff]
        %v350 = vld [vmem:[%s335 + $0x48] sm:$0xff]
        %v351 = vld [vmem:[%s335 + $0x50] sm:$0xff]
        %v352 = vld [vmem:[%s335 + $0x58] sm:$0xff]
        %v353 = vld [vmem:[%s335 + $0x60] sm:$0xff]
        %v354 = vld [vmem:[#allocation5] sm:$0x3]
        %v355 = vld [vmem:[#allocation2] ss:$8 sm:$0x3]
        %357 = vset.pattern.permute.xlu0 0
        %358 = vperm.xlu0 %357, %v341
        %v359 = vpop.permute.xlu0 %358
        %362 = vset.pattern.permute.xlu0 0
        %363 = vperm.xlu0 %362, %v342
        %v364 = vpop.permute.xlu0 %363
        %367 = vset.pattern.permute.xlu0 0
        %368 = vperm.xlu0 %367, %v343
        %v369 = vpop.permute.xlu0 %368
        %372 = vset.pattern.permute.xlu0 0
        %373 = vperm.xlu0 %372, %v344
        %v374 = vpop.permute.xlu0 %373
        %377 = vset.pattern.permute.xlu0 0
        %378 = vperm.xlu0 %377, %v345
        %v379 = vpop.permute.xlu0 %378
        %382 = vset.pattern.permute.xlu0 0
        %383 = vperm.xlu0 %382, %v346
        %v384 = vpop.permute.xlu0 %383
        %387 = vset.pattern.permute.xlu0 0
        %388 = vperm.xlu0 %387, %v347
        %v389 = vpop.permute.xlu0 %388
        %392 = vset.pattern.permute.xlu0 0
        %393 = vperm.xlu0 %392, %v348
        %v394 = vpop.permute.xlu0 %393
        %397 = vset.pattern.permute.xlu0 0
        %398 = vperm.xlu0 %397, %v349
        %v399 = vpop.permute.xlu0 %398
        %402 = vset.pattern.permute.xlu0 0
        %403 = vperm.xlu0 %402, %v350
        %v404 = vpop.permute.xlu0 %403
        %407 = vset.pattern.permute.xlu0 0
        %408 = vperm.xlu0 %407, %v351
        %v409 = vpop.permute.xlu0 %408
        %412 = vset.pattern.permute.xlu0 0
        %413 = vperm.xlu0 %412, %v352
        %v414 = vpop.permute.xlu0 %413
        %417 = vset.pattern.permute.xlu0 0
        %418 = vperm.xlu0 %417, %v353
        %v419 = vpop.permute.xlu0 %418
        %v422 = vlaneseq
        %v423 = vshrl.u32 %v422, 7
        %v424 = vsub.s32 0, %v423
        %v425 = vrot.slane %v355, %v424
        %v426 = vlaneseq
        %v427 = vshrl.u32 %v426, 7
        %v428 = vsub.s32 1, %v427
        %v429 = vrot.slane %v355, %v428
        %v432 = vmul.f32 %v359, %v425
        %v433 = vmul.f32 %v359, %v429
        %v434 = vmul.f32 %v364, %v425
        %v435 = vmul.f32 %v364, %v429
        %v436 = vmul.f32 %v369, %v425
        %v437 = vmul.f32 %v369, %v429
        %v438 = vmul.f32 %v374, %v425
        %v439 = vmul.f32 %v374, %v429
        %v440 = vmul.f32 %v379, %v425
        %v441 = vmul.f32 %v379, %v429
        %v442 = vmul.f32 %v384, %v425
        %v443 = vmul.f32 %v384, %v429
        %v444 = vmul.f32 %v389, %v425
        %v445 = vmul.f32 %v389, %v429
        %v446 = vmul.f32 %v394, %v425
        %v447 = vmul.f32 %v394, %v429
        %v448 = vmul.f32 %v399, %v425
        %v449 = vmul.f32 %v399, %v429
        %v450 = vmul.f32 %v404, %v425
        %v451 = vmul.f32 %v404, %v429
        %v452 = vmul.f32 %v409, %v425
        %v453 = vmul.f32 %v409, %v429
        %v454 = vmul.f32 %v414, %v425
        %v455 = vmul.f32 %v414, %v429
        %v456 = vmul.f32 %v419, %v425
        %v457 = vmul.f32 %v419, %v429
        %v459 = vlaneseq
        %v460 = vshrl.u32 %v459, 7
        %v461 = vsub.s32 0, %v460
        %v462 = vrot.slane %v354, %v461
        %v463 = vlaneseq
        %v464 = vshrl.u32 %v463, 7
        %v465 = vsub.s32 1, %v464
        %v466 = vrot.slane %v354, %v465
        %v469 = vadd.f32 %v462, %v432
        %v470 = vadd.f32 %v466, %v433
        %v471 = vadd.f32 %v462, %v434
        %v472 = vadd.f32 %v466, %v435
        %v473 = vadd.f32 %v462, %v436
        %v474 = vadd.f32 %v466, %v437
        %v475 = vadd.f32 %v462, %v438
        %v476 = vadd.f32 %v466, %v439
        %v477 = vadd.f32 %v462, %v440
        %v478 = vadd.f32 %v466, %v441
        %v479 = vadd.f32 %v462, %v442
        %v480 = vadd.f32 %v466, %v443
        %v481 = vadd.f32 %v462, %v444
        %v482 = vadd.f32 %v466, %v445
        %v483 = vadd.f32 %v462, %v446
        %v484 = vadd.f32 %v466, %v447
        %v485 = vadd.f32 %v462, %v448
        %v486 = vadd.f32 %v466, %v449
        %v487 = vadd.f32 %v462, %v450
        %v488 = vadd.f32 %v466, %v451
        %v489 = vadd.f32 %v462, %v452
        %v490 = vadd.f32 %v466, %v453
        %v491 = vadd.f32 %v462, %v454
        %v492 = vadd.f32 %v466, %v455
        %v493 = vadd.f32 %v462, %v456
        %v494 = vadd.f32 %v466, %v457
        %s495 = scalar_lea.vmem [#allocation2], 1
        %v496 = vld [vmem:[%s495] ss:$8 sm:$0x3]
        %497 = vset.pattern.permute.xlu0 1
        %498 = vperm.xlu0 %497, %v341
        %v499 = vpop.permute.xlu0 %498
        %501 = vset.pattern.permute.xlu0 1
        %502 = vperm.xlu0 %501, %v342
        %v503 = vpop.permute.xlu0 %502
        %505 = vset.pattern.permute.xlu0 1
        %506 = vperm.xlu0 %505, %v343
        %v507 = vpop.permute.xlu0 %506
        %509 = vset.pattern.permute.xlu0 1
        %510 = vperm.xlu0 %509, %v344
        %v511 = vpop.permute.xlu0 %510
        %513 = vset.pattern.permute.xlu0 1
        %514 = vperm.xlu0 %513, %v345
        %v515 = vpop.permute.xlu0 %514
        %517 = vset.pattern.permute.xlu0 1
        %518 = vperm.xlu0 %517, %v346
        %v519 = vpop.permute.xlu0 %518
        %521 = vset.pattern.permute.xlu0 1
        %522 = vperm.xlu0 %521, %v347
        %v523 = vpop.permute.xlu0 %522
        %525 = vset.pattern.permute.xlu0 1
        %526 = vperm.xlu0 %525, %v348
        %v527 = vpop.permute.xlu0 %526
        %529 = vset.pattern.permute.xlu0 1
        %530 = vperm.xlu0 %529, %v349
        %v531 = vpop.permute.xlu0 %530
        %533 = vset.pattern.permute.xlu0 1
        %534 = vperm.xlu0 %533, %v350
        %v535 = vpop.permute.xlu0 %534
        %537 = vset.pattern.permute.xlu0 1
        %538 = vperm.xlu0 %537, %v351
        %v539 = vpop.permute.xlu0 %538
        %541 = vset.pattern.permute.xlu0 1
        %542 = vperm.xlu0 %541, %v352
        %v543 = vpop.permute.xlu0 %542
        %545 = vset.pattern.permute.xlu0 1
        %546 = vperm.xlu0 %545, %v353
        %v547 = vpop.permute.xlu0 %546
        %v550 = vlaneseq
        %v551 = vshrl.u32 %v550, 7
        %v552 = vsub.s32 0, %v551
        %v553 = vrot.slane %v496, %v552
        %v554 = vlaneseq
        %v555 = vshrl.u32 %v554, 7
        %v556 = vsub.s32 1, %v555
        %v557 = vrot.slane %v496, %v556
        %v560 = vmul.f32 %v499, %v553
        %v561 = vmul.f32 %v499, %v557
        %v562 = vmul.f32 %v503, %v553
        %v563 = vmul.f32 %v503, %v557
        %v564 = vmul.f32 %v507, %v553
        %v565 = vmul.f32 %v507, %v557
        %v566 = vmul.f32 %v511, %v553
        %v567 = vmul.f32 %v511, %v557
        %v568 = vmul.f32 %v515, %v553
        %v569 = vmul.f32 %v515, %v557
        %v570 = vmul.f32 %v519, %v553
        %v571 = vmul.f32 %v519, %v557
        %v572 = vmul.f32 %v523, %v553
        %v573 = vmul.f32 %v523, %v557
        %v574 = vmul.f32 %v527, %v553
        %v575 = vmul.f32 %v527, %v557
        %v576 = vmul.f32 %v531, %v553
        %v577 = vmul.f32 %v531, %v557
        %v578 = vmul.f32 %v535, %v553
        %v579 = vmul.f32 %v535, %v557
        %v580 = vmul.f32 %v539, %v553
        %v581 = vmul.f32 %v539, %v557
        %v582 = vmul.f32 %v543, %v553
        %v583 = vmul.f32 %v543, %v557
        %v584 = vmul.f32 %v547, %v553
        %v585 = vmul.f32 %v547, %v557
        %v586 = vadd.f32 %v469, %v560
        %v587 = vadd.f32 %v470, %v561
        %v588 = vadd.f32 %v471, %v562
        %v589 = vadd.f32 %v472, %v563
        %v590 = vadd.f32 %v473, %v564
        %v591 = vadd.f32 %v474, %v565
        %v592 = vadd.f32 %v475, %v566
        %v593 = vadd.f32 %v476, %v567
        %v594 = vadd.f32 %v477, %v568
        %v595 = vadd.f32 %v478, %v569
        %v596 = vadd.f32 %v479, %v570
        %v597 = vadd.f32 %v480, %v571
        %v598 = vadd.f32 %v481, %v572
        %v599 = vadd.f32 %v482, %v573
        %v600 = vadd.f32 %v483, %v574
        %v601 = vadd.f32 %v484, %v575
        %v602 = vadd.f32 %v485, %v576
        %v603 = vadd.f32 %v486, %v577
        %v604 = vadd.f32 %v487, %v578
        %v605 = vadd.f32 %v488, %v579
        %v606 = vadd.f32 %v489, %v580
        %v607 = vadd.f32 %v490, %v581
        %v608 = vadd.f32 %v491, %v582
        %v609 = vadd.f32 %v492, %v583
        %v610 = vadd.f32 %v493, %v584
        %v611 = vadd.f32 %v494, %v585
        %s612 = scalar_lea.vmem [#allocation2], 2
        %v613 = vld [vmem:[%s612] ss:$8 sm:$0x3]
        %614 = vset.pattern.permute.xlu0 2
        %615 = vperm.xlu0 %614, %v341
        %v616 = vpop.permute.xlu0 %615
        %618 = vset.pattern.permute.xlu0 2
        %619 = vperm.xlu0 %618, %v342
        %v620 = vpop.permute.xlu0 %619
        %622 = vset.pattern.permute.xlu0 2
        %623 = vperm.xlu0 %622, %v343
        %v624 = vpop.permute.xlu0 %623
        %626 = vset.pattern.permute.xlu0 2
        %627 = vperm.xlu0 %626, %v344
        %v628 = vpop.permute.xlu0 %627
        %630 = vset.pattern.permute.xlu0 2
        %631 = vperm.xlu0 %630, %v345
        %v632 = vpop.permute.xlu0 %631
        %634 = vset.pattern.permute.xlu0 2
        %635 = vperm.xlu0 %634, %v346
        %v636 = vpop.permute.xlu0 %635
        %638 = vset.pattern.permute.xlu0 2
        %639 = vperm.xlu0 %638, %v347
        %v640 = vpop.permute.xlu0 %639
        %642 = vset.pattern.permute.xlu0 2
        %643 = vperm.xlu0 %642, %v348
        %v644 = vpop.permute.xlu0 %643
        %646 = vset.pattern.permute.xlu0 2
        %647 = vperm.xlu0 %646, %v349
        %v648 = vpop.permute.xlu0 %647
        %650 = vset.pattern.permute.xlu0 2
        %651 = vperm.xlu0 %650, %v350
        %v652 = vpop.permute.xlu0 %651
        %654 = vset.pattern.permute.xlu0 2
        %655 = vperm.xlu0 %654, %v351
        %v656 = vpop.permute.xlu0 %655
        %658 = vset.pattern.permute.xlu0 2
        %659 = vperm.xlu0 %658, %v352
        %v660 = vpop.permute.xlu0 %659
        %662 = vset.pattern.permute.xlu0 2
        %663 = vperm.xlu0 %662, %v353
        %v664 = vpop.permute.xlu0 %663
        %v667 = vlaneseq
        %v668 = vshrl.u32 %v667, 7
        %v669 = vsub.s32 0, %v668
        %v670 = vrot.slane %v613, %v669
        %v671 = vlaneseq
        %v672 = vshrl.u32 %v671, 7
        %v673 = vsub.s32 1, %v672
        %v674 = vrot.slane %v613, %v673
        %v677 = vmul.f32 %v616, %v670
        %v678 = vmul.f32 %v616, %v674
        %v679 = vmul.f32 %v620, %v670
        %v680 = vmul.f32 %v620, %v674
        %v681 = vmul.f32 %v624, %v670
        %v682 = vmul.f32 %v624, %v674
        %v683 = vmul.f32 %v628, %v670
        %v684 = vmul.f32 %v628, %v674
        %v685 = vmul.f32 %v632, %v670
        %v686 = vmul.f32 %v632, %v674
        %v687 = vmul.f32 %v636, %v670
        %v688 = vmul.f32 %v636, %v674
        %v689 = vmul.f32 %v640, %v670
        %v690 = vmul.f32 %v640, %v674
        %v691 = vmul.f32 %v644, %v670
        %v692 = vmul.f32 %v644, %v674
        %v693 = vmul.f32 %v648, %v670
        %v694 = vmul.f32 %v648, %v674
        %v695 = vmul.f32 %v652, %v670
        %v696 = vmul.f32 %v652, %v674
        %v697 = vmul.f32 %v656, %v670
        %v698 = vmul.f32 %v656, %v674
        %v699 = vmul.f32 %v660, %v670
        %v700 = vmul.f32 %v660, %v674
        %v701 = vmul.f32 %v664, %v670
        %v702 = vmul.f32 %v664, %v674
        %v703 = vadd.f32 %v586, %v677
        %v704 = vadd.f32 %v587, %v678
        %v705 = vadd.f32 %v588, %v679
        %v706 = vadd.f32 %v589, %v680
        %v707 = vadd.f32 %v590, %v681
        %v708 = vadd.f32 %v591, %v682
        %v709 = vadd.f32 %v592, %v683
        %v710 = vadd.f32 %v593, %v684
        %v711 = vadd.f32 %v594, %v685
        %v712 = vadd.f32 %v595, %v686
        %v713 = vadd.f32 %v596, %v687
        %v714 = vadd.f32 %v597, %v688
        %v715 = vadd.f32 %v598, %v689
        %v716 = vadd.f32 %v599, %v690
        %v717 = vadd.f32 %v600, %v691
        %v718 = vadd.f32 %v601, %v692
        %v719 = vadd.f32 %v602, %v693
        %v720 = vadd.f32 %v603, %v694
        %v721 = vadd.f32 %v604, %v695
        %v722 = vadd.f32 %v605, %v696
        %v723 = vadd.f32 %v606, %v697
        %v724 = vadd.f32 %v607, %v698
        %v725 = vadd.f32 %v608, %v699
        %v726 = vadd.f32 %v609, %v700
        %v727 = vadd.f32 %v610, %v701
        %v728 = vadd.f32 %v611, %v702
        %vm729 = vcmp.gt.f32.partialorder %v703, 0.0
        %vm730 = vcmp.gt.f32.partialorder %v704, 0.0
        %vm731 = vcmp.gt.f32.partialorder %v705, 0.0
        %vm732 = vcmp.gt.f32.partialorder %v706, 0.0
        %vm733 = vcmp.gt.f32.partialorder %v707, 0.0
        %vm734 = vcmp.gt.f32.partialorder %v708, 0.0
        %vm735 = vcmp.gt.f32.partialorder %v709, 0.0
        %vm736 = vcmp.gt.f32.partialorder %v710, 0.0
        %vm737 = vcmp.gt.f32.partialorder %v711, 0.0
        %vm738 = vcmp.gt.f32.partialorder %v712, 0.0
        %vm739 = vcmp.gt.f32.partialorder %v713, 0.0
        %vm740 = vcmp.gt.f32.partialorder %v714, 0.0
        %vm741 = vcmp.gt.f32.partialorder %v715, 0.0
        %vm742 = vcmp.gt.f32.partialorder %v716, 0.0
        %vm743 = vcmp.gt.f32.partialorder %v717, 0.0
        %vm744 = vcmp.gt.f32.partialorder %v718, 0.0
        %vm745 = vcmp.gt.f32.partialorder %v719, 0.0
        %vm746 = vcmp.gt.f32.partialorder %v720, 0.0
        %vm747 = vcmp.gt.f32.partialorder %v721, 0.0
        %vm748 = vcmp.gt.f32.partialorder %v722, 0.0
        %vm749 = vcmp.gt.f32.partialorder %v723, 0.0
        %vm750 = vcmp.gt.f32.partialorder %v724, 0.0
        %vm751 = vcmp.gt.f32.partialorder %v725, 0.0
        %vm752 = vcmp.gt.f32.partialorder %v726, 0.0
        %vm753 = vcmp.gt.f32.partialorder %v727, 0.0
        %vm754 = vcmp.gt.f32.partialorder %v728, 0.0
        %v755 = vmul.f32 %v703, 0.01
        %v756 = vmul.f32 %v704, 0.01
        %v757 = vmul.f32 %v705, 0.01
        %v758 = vmul.f32 %v706, 0.01
        %v759 = vmul.f32 %v707, 0.01
        %v760 = vmul.f32 %v708, 0.01
        %v761 = vmul.f32 %v709, 0.01
        %v762 = vmul.f32 %v710, 0.01
        %v763 = vmul.f32 %v711, 0.01
        %v764 = vmul.f32 %v712, 0.01
        %v765 = vmul.f32 %v713, 0.01
        %v766 = vmul.f32 %v714, 0.01
        %v767 = vmul.f32 %v715, 0.01
        %v768 = vmul.f32 %v716, 0.01
        %v769 = vmul.f32 %v717, 0.01
        %v770 = vmul.f32 %v718, 0.01
        %v771 = vmul.f32 %v719, 0.01
        %v772 = vmul.f32 %v720, 0.01
        %v773 = vmul.f32 %v721, 0.01
        %v774 = vmul.f32 %v722, 0.01
        %v775 = vmul.f32 %v723, 0.01
        %v776 = vmul.f32 %v724, 0.01
        %v777 = vmul.f32 %v725, 0.01
        %v778 = vmul.f32 %v726, 0.01
        %v779 = vmul.f32 %v727, 0.01
        %v780 = vmul.f32 %v728, 0.01
        %v781 = vsel %vm729, %v703, %v755
        %v782 = vsel %vm730, %v704, %v756
        %v783 = vsel %vm731, %v705, %v757
        %v784 = vsel %vm732, %v706, %v758
        %v785 = vsel %vm733, %v707, %v759
        %v786 = vsel %vm734, %v708, %v760
        %v787 = vsel %vm735, %v709, %v761
        %v788 = vsel %vm736, %v710, %v762
        %v789 = vsel %vm737, %v711, %v763
        %v790 = vsel %vm738, %v712, %v764
        %v791 = vsel %vm739, %v713, %v765
        %v792 = vsel %vm740, %v714, %v766
        %v793 = vsel %vm741, %v715, %v767
        %v794 = vsel %vm742, %v716, %v768
        %v795 = vsel %vm743, %v717, %v769
        %v796 = vsel %vm744, %v718, %v770
        %v797 = vsel %vm745, %v719, %v771
        %v798 = vsel %vm746, %v720, %v772
        %v799 = vsel %vm747, %v721, %v773
        %v800 = vsel %vm748, %v722, %v774
        %v801 = vsel %vm749, %v723, %v775
        %v802 = vsel %vm750, %v724, %v776
        %v803 = vsel %vm751, %v725, %v777
        %v804 = vsel %vm752, %v726, %v778
        %v805 = vsel %vm753, %v727, %v779
        %v806 = vsel %vm754, %v728, %v780
        %v807 = vld [vmem:[%s285] sm:$0xff]
        %v808 = vld [vmem:[%s285 + $0x8] sm:$0xff]
        %v809 = vld [vmem:[%s285 + $0x10] sm:$0xff]
        %v810 = vld [vmem:[%s285 + $0x18] sm:$0xff]
        %v811 = vld [vmem:[%s285 + $0x20] sm:$0xff]
        %v812 = vld [vmem:[%s285 + $0x28] sm:$0xff]
        %v813 = vld [vmem:[%s285 + $0x30] sm:$0xff]
        %v814 = vld [vmem:[%s285 + $0x38] sm:$0xff]
        %v815 = vld [vmem:[%s285 + $0x40] sm:$0xff]
        %v816 = vld [vmem:[%s285 + $0x48] sm:$0xff]
        %v817 = vld [vmem:[%s285 + $0x50] sm:$0xff]
        %v818 = vld [vmem:[%s285 + $0x58] sm:$0xff]
        %v819 = vld [vmem:[%s285 + $0x60] sm:$0xff]
        %v820 = vld [vmem:[%s285 + $0x68] sm:$0xff]
        %v821 = vld [vmem:[%s285 + $0x70] sm:$0xff]
        %v822 = vld [vmem:[%s285 + $0x78] sm:$0xff]
        %v823 = vld [vmem:[%s285 + $0x80] sm:$0xff]
        %v824 = vld [vmem:[%s285 + $0x88] sm:$0xff]
        %v825 = vld [vmem:[%s285 + $0x90] sm:$0xff]
        %v826 = vld [vmem:[%s285 + $0x98] sm:$0xff]
        %v827 = vld [vmem:[%s285 + $0xa0] sm:$0xff]
        %v828 = vld [vmem:[%s285 + $0xa8] sm:$0xff]
        %v829 = vld [vmem:[%s285 + $0xb0] sm:$0xff]
        %v830 = vld [vmem:[%s285 + $0xb8] sm:$0xff]
        %v831 = vld [vmem:[%s285 + $0xc0] sm:$0xff]
        %v832 = vld [vmem:[%s285 + $0xc8] sm:$0xff]
        %v833 = vld [vmem:[%s285 + $0xd0] sm:$0xff]
        %v834 = vld [vmem:[%s285 + $0xd8] sm:$0xff]
        %v835 = vld [vmem:[%s285 + $0xe0] sm:$0xff]
        %v836 = vld [vmem:[%s285 + $0xe8] sm:$0xff]
        %v837 = vld [vmem:[%s285 + $0xf0] sm:$0xff]
        %v838 = vld [vmem:[%s285 + $0xf8] sm:$0xff]
        %v839 = vld [vmem:[%s285 + $0x100] sm:$0xff]
        %v840 = vld [vmem:[%s285 + $0x108] sm:$0xff]
        %v841 = vld [vmem:[%s285 + $0x110] sm:$0xff]
        %v842 = vld [vmem:[%s285 + $0x118] sm:$0xff]
        %v843 = vld [vmem:[%s285 + $0x120] sm:$0xff]
        %v844 = vld [vmem:[%s285 + $0x128] sm:$0xff]
        %v845 = vld [vmem:[%s285 + $0x130] sm:$0xff]
        %v846 = vld [vmem:[%s285 + $0x138] sm:$0xff]
        %v847 = vld [vmem:[%s285 + $0x140] sm:$0xff]
        %v848 = vld [vmem:[%s285 + $0x148] sm:$0xff]
        %v849 = vld [vmem:[%s285 + $0x150] sm:$0xff]
        %v850 = vld [vmem:[%s285 + $0x158] sm:$0xff]
        %v851 = vld [vmem:[%s285 + $0x160] sm:$0xff]
        %v852 = vld [vmem:[%s285 + $0x168] sm:$0xff]
        %v853 = vld [vmem:[%s285 + $0x170] sm:$0xff]
        %v854 = vld [vmem:[%s285 + $0x178] sm:$0xff]
        %v855 = vld [vmem:[%s285 + $0x180] sm:$0xff]
        %v856 = vld [vmem:[%s285 + $0x188] sm:$0xff]
        %v857 = vld [vmem:[%s285 + $0x190] sm:$0xff]
        %v858 = vld [vmem:[%s285 + $0x198] sm:$0xff]
        %v859 = vld [vmem:[%s285 + $0x1a0] sm:$0xff]
        %v860 = vld [vmem:[%s285 + $0x1a8] sm:$0xff]
        %v861 = vld [vmem:[%s285 + $0x1b0] sm:$0xff]
        %v862 = vld [vmem:[%s285 + $0x1b8] sm:$0xff]
        %v863 = vld [vmem:[%s285 + $0x1c0] sm:$0xff]
        %v864 = vld [vmem:[%s285 + $0x1c8] sm:$0xff]
        %v865 = vld [vmem:[%s285 + $0x1d0] sm:$0xff]
        %v866 = vld [vmem:[%s285 + $0x1d8] sm:$0xff]
        %v867 = vld [vmem:[%s285 + $0x1e0] sm:$0xff]
        %v868 = vld [vmem:[%s285 + $0x1e8] sm:$0xff]
        %v869 = vld [vmem:[%s285 + $0x1f0] sm:$0xff]
        %v870 = vld [vmem:[%s285 + $0x1f8] sm:$0xff]
        %v871 = vld [vmem:[%s285 + $0x200] sm:$0xff]
        %v872 = vld [vmem:[%s285 + $0x208] sm:$0xff]
        %v873 = vld [vmem:[%s285 + $0x210] sm:$0xff]
        %v874 = vld [vmem:[%s285 + $0x218] sm:$0xff]
        %v875 = vld [vmem:[%s285 + $0x220] sm:$0xff]
        %v876 = vld [vmem:[%s285 + $0x228] sm:$0xff]
        %v877 = vld [vmem:[%s285 + $0x230] sm:$0xff]
        %v878 = vld [vmem:[%s285 + $0x238] sm:$0xff]
        %v879 = vld [vmem:[%s285 + $0x240] sm:$0xff]
        %v880 = vld [vmem:[%s285 + $0x248] sm:$0xff]
        %v881 = vld [vmem:[%s285 + $0x250] sm:$0xff]
        %v882 = vld [vmem:[%s285 + $0x258] sm:$0xff]
        %v883 = vld [vmem:[%s285 + $0x260] sm:$0xff]
        %v884 = vld [vmem:[%s285 + $0x268] sm:$0xff]
        %v885 = vld [vmem:[%s285 + $0x270] sm:$0xff]
        %v886 = vld [vmem:[%s285 + $0x278] sm:$0xff]
        %v887 = vld [vmem:[%s285 + $0x280] sm:$0xff]
        %v888 = vld [vmem:[%s285 + $0x288] sm:$0xff]
        %v889 = vld [vmem:[%s285 + $0x290] sm:$0xff]
        %v890 = vld [vmem:[%s285 + $0x298] sm:$0xff]
        %v891 = vld [vmem:[%s285 + $0x2a0] sm:$0xff]
        %v892 = vld [vmem:[%s285 + $0x2a8] sm:$0xff]
        %v893 = vld [vmem:[%s285 + $0x2b0] sm:$0xff]
        %v894 = vld [vmem:[%s285 + $0x2b8] sm:$0xff]
        %v895 = vld [vmem:[%s285 + $0x2c0] sm:$0xff]
        %v896 = vld [vmem:[%s285 + $0x2c8] sm:$0xff]
        %v897 = vld [vmem:[%s285 + $0x2d0] sm:$0xff]
        %v898 = vld [vmem:[%s285 + $0x2d8] sm:$0xff]
        %v899 = vld [vmem:[%s285 + $0x2e0] sm:$0xff]
        %v900 = vld [vmem:[%s285 + $0x2e8] sm:$0xff]
        %v901 = vld [vmem:[%s285 + $0x2f0] sm:$0xff]
        %v902 = vld [vmem:[%s285 + $0x2f8] sm:$0xff]
        %v903 = vld [vmem:[%s294] sm:$0x7]
        %v905 = vlaneseq
        %v906 = vshrl.u32 %v905, 7
        %v907 = vsub.s32 0, %v906
        %v908 = vrot.slane %v903, %v907
        %v909 = vlaneseq
        %v910 = vshrl.u32 %v909, 7
        %v911 = vsub.s32 1, %v910
        %v912 = vrot.slane %v903, %v911
        %v913 = vlaneseq
        %v914 = vshrl.u32 %v913, 7
        %v915 = vsub.s32 2, %v914
        %v916 = vrot.slane %v903, %v915
        %920 = vmatprep.subr.mxu0 %v853
        %921 = vmatpush1.msra.mxu0 %v852
        %922 = vmatprep.subr.mxu0 %v850
        %923 = vmatpush1.msra.mxu0 %v849
        %924 = vmatprep.subr.mxu0 %v847
        %925 = vmatpush1.msra.mxu0 %v846
        %926 = vmatprep.subr.mxu0 %v844
        %927 = vmatpush1.msra.mxu0 %v843
        %928 = vmatprep.subr.mxu0 %v841
        %929 = vmatpush1.msra.mxu0 %v840
        %930 = vmatprep.subr.mxu0 %v838
        %931 = vmatpush1.msra.mxu0 %v837
        %932 = vmatprep.subr.mxu0 %v835
        %933 = vmatpush1.msra.mxu0 %v834
        %934 = vmatprep.subr.mxu0 %v832
        %935 = vmatpush1.msra.mxu0 %v831
        %936 = vmatprep.subr.mxu0 %v829
        %937 = vmatpush1.msra.mxu0 %v828
        %938 = vmatprep.subr.mxu0 %v826
        %939 = vmatpush1.msra.mxu0 %v825
        %940 = vmatprep.subr.mxu0 %v823
        %941 = vmatpush1.msra.mxu0 %v822
        %942 = vmatprep.subr.mxu0 %v820
        %943 = vmatpush1.msra.mxu0 %v819
        %944 = vmatprep.subr.mxu0 %v817
        %945 = vmatpush1.msra.mxu0 %v816
        %946 = vmatprep.subr.mxu0 %v814
        %947 = vmatpush1.msra.mxu0 %v813
        %948 = vmatprep.subr.mxu0 %v811
        %949 = vmatpush1.msra.mxu0 %v810
        %950 = vmatprep.subr.mxu0 %v808
        %951 = vmatpush1.msra.mxu0 %v807
        %952 = vmatprep.subr.mxu0 %v901
        %953 = vmatpush2.msra.mxu0 %v900
        %954 = vmatprep.subr.mxu0 %v898
        %955 = vmatpush2.msra.mxu0 %v897
        %956 = vmatprep.subr.mxu0 %v895
        %957 = vmatpush2.msra.mxu0 %v894
        %958 = vmatprep.subr.mxu0 %v892
        %959 = vmatpush2.msra.mxu0 %v891
        %960 = vmatprep.subr.mxu0 %v889
        %961 = vmatpush2.msra.mxu0 %v888
        %962 = vmatprep.subr.mxu0 %v886
        %963 = vmatpush2.msra.mxu0 %v885
        %964 = vmatprep.subr.mxu0 %v883
        %965 = vmatpush2.msra.mxu0 %v882
        %966 = vmatprep.subr.mxu0 %v880
        %967 = vmatpush2.msra.mxu0 %v879
        %968 = vmatprep.subr.mxu0 %v877
        %969 = vmatpush2.msra.mxu0 %v876
        %970 = vmatprep.subr.mxu0 %v874
        %971 = vmatpush2.msra.mxu0 %v873
        %972 = vmatprep.subr.mxu0 %v871
        %973 = vmatpush2.msra.mxu0 %v870
        %974 = vmatprep.subr.mxu0 %v868
        %975 = vmatpush2.msra.mxu0 %v867
        %976 = vmatprep.subr.mxu0 %v865
        %977 = vmatpush2.msra.mxu0 %v864
        %978 = vmatprep.subr.mxu0 %v862
        %979 = vmatpush2.msra.mxu0 %v861
        %980 = vmatprep.subr.mxu0 %v859
        %981 = vmatpush2.msra.mxu0 %v858
        %982 = vmatprep.subr.mxu0 %v856
        %983 = vmatpush2.msra.mxu0 %v855
        %984 = vmatprep.mubr.f32.mxu0 %v782
        %985 = vmatmul.mubr.f32.gmra.mxu0 %v781
        %v986 = vpop.f32.mrf.mxu0
        %v987 = vadd.f32 %v908, %v986
        %v988 = vpop.f32.mrf.mxu0
        %v989 = vadd.f32 %v912, %v988
        %990 = vmatprep.mubr.f32.mxu0 %v784
        %991 = vmatmul.mubr.f32.gmra.mxu0 %v783
        %v992 = vpop.f32.mrf.mxu0
        %v993 = vadd.f32 %v908, %v992
        %v994 = vpop.f32.mrf.mxu0
        %v995 = vadd.f32 %v912, %v994
        %996 = vmatprep.mubr.f32.mxu0 %v786
        %997 = vmatmul.mubr.f32.gmra.mxu0 %v785
        %v998 = vpop.f32.mrf.mxu0
        %v999 = vadd.f32 %v908, %v998
        %v1000 = vpop.f32.mrf.mxu0
        %v1001 = vadd.f32 %v912, %v1000
        %1002 = vmatprep.mubr.f32.mxu0 %v788
        %1003 = vmatmul.mubr.f32.gmra.mxu0 %v787
        %v1004 = vpop.f32.mrf.mxu0
        %v1005 = vadd.f32 %v908, %v1004
        %v1006 = vpop.f32.mrf.mxu0
        %v1007 = vadd.f32 %v912, %v1006
        %1008 = vmatprep.mubr.f32.mxu0 %v790
        %1009 = vmatmul.mubr.f32.gmra.mxu0 %v789
        %v1010 = vpop.f32.mrf.mxu0
        %v1011 = vadd.f32 %v908, %v1010
        %v1012 = vpop.f32.mrf.mxu0
        %v1013 = vadd.f32 %v912, %v1012
        %1014 = vmatprep.mubr.f32.mxu0 %v792
        %1015 = vmatmul.mubr.f32.gmra.mxu0 %v791
        %v1016 = vpop.f32.mrf.mxu0
        %v1017 = vadd.f32 %v908, %v1016
        %v1018 = vpop.f32.mrf.mxu0
        %v1019 = vadd.f32 %v912, %v1018
        %1020 = vmatprep.mubr.f32.mxu0 %v794
        %1021 = vmatmul.mubr.f32.gmra.mxu0 %v793
        %v1022 = vpop.f32.mrf.mxu0
        %v1023 = vadd.f32 %v908, %v1022
        %v1024 = vpop.f32.mrf.mxu0
        %v1025 = vadd.f32 %v912, %v1024
        %1026 = vmatprep.mubr.f32.mxu0 %v796
        %1027 = vmatmul.mubr.f32.gmra.mxu0 %v795
        %v1028 = vpop.f32.mrf.mxu0
        %v1029 = vadd.f32 %v908, %v1028
        %v1030 = vpop.f32.mrf.mxu0
        %v1031 = vadd.f32 %v912, %v1030
        %1032 = vmatprep.mubr.f32.mxu0 %v798
        %1033 = vmatmul.mubr.f32.gmra.mxu0 %v797
        %v1034 = vpop.f32.mrf.mxu0
        %v1035 = vadd.f32 %v908, %v1034
        %v1036 = vpop.f32.mrf.mxu0
        %v1037 = vadd.f32 %v912, %v1036
        %1038 = vmatprep.mubr.f32.mxu0 %v800
        %1039 = vmatmul.mubr.f32.gmra.mxu0 %v799
        %v1040 = vpop.f32.mrf.mxu0
        %v1041 = vadd.f32 %v908, %v1040
        %v1042 = vpop.f32.mrf.mxu0
        %v1043 = vadd.f32 %v912, %v1042
        %1044 = vmatprep.mubr.f32.mxu0 %v802
        %1045 = vmatmul.mubr.f32.gmra.mxu0 %v801
        %v1046 = vpop.f32.mrf.mxu0
        %v1047 = vadd.f32 %v908, %v1046
        %v1048 = vpop.f32.mrf.mxu0
        %v1049 = vadd.f32 %v912, %v1048
        %1050 = vmatprep.mubr.f32.mxu0 %v804
        %1051 = vmatmul.mubr.f32.gmra.mxu0 %v803
        %v1052 = vpop.f32.mrf.mxu0
        %v1053 = vadd.f32 %v908, %v1052
        %v1054 = vpop.f32.mrf.mxu0
        %v1055 = vadd.f32 %v912, %v1054
        %1056 = vmatprep.mubr.f32.mxu0 %v806
        %1057 = vmatmul.mubr.f32.gmra.mxu0 %v805
        %v1058 = vpop.f32.mrf.mxu0
        %v1059 = vadd.f32 %v908, %v1058
        %v1060 = vpop.f32.mrf.mxu0
        %v1061 = vadd.f32 %v912, %v1060
        %1062 = vdwg.mxu0
        %1063 = vmatprep.subr.mxu0 0.0
        %1064 = vmatpush1.msra.mxu0 %v854
        %1065 = vmatprep.subr.mxu0 0.0
        %1066 = vmatpush1.msra.mxu0 %v851
        %1067 = vmatprep.subr.mxu0 0.0
        %1068 = vmatpush1.msra.mxu0 %v848
        %1069 = vmatprep.subr.mxu0 0.0
        %1070 = vmatpush1.msra.mxu0 %v845
        %1071 = vmatprep.subr.mxu0 0.0
        %1072 = vmatpush1.msra.mxu0 %v842
        %1073 = vmatprep.subr.mxu0 0.0
        %1074 = vmatpush1.msra.mxu0 %v839
        %1075 = vmatprep.subr.mxu0 0.0
        %1076 = vmatpush1.msra.mxu0 %v836
        %1077 = vmatprep.subr.mxu0 0.0
        %1078 = vmatpush1.msra.mxu0 %v833
        %1079 = vmatprep.subr.mxu0 0.0
        %1080 = vmatpush1.msra.mxu0 %v830
        %1081 = vmatprep.subr.mxu0 0.0
        %1082 = vmatpush1.msra.mxu0 %v827
        %1083 = vmatprep.subr.mxu0 0.0
        %1084 = vmatpush1.msra.mxu0 %v824
        %1085 = vmatprep.subr.mxu0 0.0
        %1086 = vmatpush1.msra.mxu0 %v821
        %1087 = vmatprep.subr.mxu0 0.0
        %1088 = vmatpush1.msra.mxu0 %v818
        %1089 = vmatprep.subr.mxu0 0.0
        %1090 = vmatpush1.msra.mxu0 %v815
        %1091 = vmatprep.subr.mxu0 0.0
        %1092 = vmatpush1.msra.mxu0 %v812
        %1093 = vmatprep.subr.mxu0 0.0
        %1094 = vmatpush1.msra.mxu0 %v809
        %1095 = vmatprep.subr.mxu0 0.0
        %1096 = vmatpush2.msra.mxu0 %v902
        %1097 = vmatprep.subr.mxu0 0.0
        %1098 = vmatpush2.msra.mxu0 %v899
        %1099 = vmatprep.subr.mxu0 0.0
        %1100 = vmatpush2.msra.mxu0 %v896
        %1101 = vmatprep.subr.mxu0 0.0
        %1102 = vmatpush2.msra.mxu0 %v893
        %1103 = vmatprep.subr.mxu0 0.0
        %1104 = vmatpush2.msra.mxu0 %v890
        %1105 = vmatprep.subr.mxu0 0.0
        %1106 = vmatpush2.msra.mxu0 %v887
        %1107 = vmatprep.subr.mxu0 0.0
        %1108 = vmatpush2.msra.mxu0 %v884
        %1109 = vmatprep.subr.mxu0 0.0
        %1110 = vmatpush2.msra.mxu0 %v881
        %1111 = vmatprep.subr.mxu0 0.0
        %1112 = vmatpush2.msra.mxu0 %v878
        %1113 = vmatprep.subr.mxu0 0.0
        %1114 = vmatpush2.msra.mxu0 %v875
        %1115 = vmatprep.subr.mxu0 0.0
        %1116 = vmatpush2.msra.mxu0 %v872
        %1117 = vmatprep.subr.mxu0 0.0
        %1118 = vmatpush2.msra.mxu0 %v869
        %1119 = vmatprep.subr.mxu0 0.0
        %1120 = vmatpush2.msra.mxu0 %v866
        %1121 = vmatprep.subr.mxu0 0.0
        %1122 = vmatpush2.msra.mxu0 %v863
        %1123 = vmatprep.subr.mxu0 0.0
        %1124 = vmatpush2.msra.mxu0 %v860
        %1125 = vmatprep.subr.mxu0 0.0
        %1126 = vmatpush2.msra.mxu0 %v857
        %1127 = vmatprep.mubr.f32.mxu0 %v782
        %1128 = vmatmul.mubr.f32.gmra.mxu0 %v781
        %v1129 = vpop.f32.mrf.mxu0
        %v1130 = vadd.f32 %v916, %v1129
        %v1131 = vpop.f32.mrf.mxu0
        %1132 = vmatprep.mubr.f32.mxu0 %v784
        %1133 = vmatmul.mubr.f32.gmra.mxu0 %v783
        %v1134 = vpop.f32.mrf.mxu0
        %v1135 = vadd.f32 %v916, %v1134
        %v1136 = vpop.f32.mrf.mxu0
        %1137 = vmatprep.mubr.f32.mxu0 %v786
        %1138 = vmatmul.mubr.f32.gmra.mxu0 %v785
        %v1139 = vpop.f32.mrf.mxu0
        %v1140 = vadd.f32 %v916, %v1139
        %v1141 = vpop.f32.mrf.mxu0
        %1142 = vmatprep.mubr.f32.mxu0 %v788
        %1143 = vmatmul.mubr.f32.gmra.mxu0 %v787
        %v1144 = vpop.f32.mrf.mxu0
        %v1145 = vadd.f32 %v916, %v1144
        %v1146 = vpop.f32.mrf.mxu0
        %1147 = vmatprep.mubr.f32.mxu0 %v790
        %1148 = vmatmul.mubr.f32.gmra.mxu0 %v789
        %v1149 = vpop.f32.mrf.mxu0
        %v1150 = vadd.f32 %v916, %v1149
        %v1151 = vpop.f32.mrf.mxu0
        %1152 = vmatprep.mubr.f32.mxu0 %v792
        %1153 = vmatmul.mubr.f32.gmra.mxu0 %v791
        %v1154 = vpop.f32.mrf.mxu0
        %v1155 = vadd.f32 %v916, %v1154
        %v1156 = vpop.f32.mrf.mxu0
        %1157 = vmatprep.mubr.f32.mxu0 %v794
        %1158 = vmatmul.mubr.f32.gmra.mxu0 %v793
        %v1159 = vpop.f32.mrf.mxu0
        %v1160 = vadd.f32 %v916, %v1159
        %v1161 = vpop.f32.mrf.mxu0
        %1162 = vmatprep.mubr.f32.mxu0 %v796
        %1163 = vmatmul.mubr.f32.gmra.mxu0 %v795
        %v1164 = vpop.f32.mrf.mxu0
        %v1165 = vadd.f32 %v916, %v1164
        %v1166 = vpop.f32.mrf.mxu0
        %1167 = vmatprep.mubr.f32.mxu0 %v798
        %1168 = vmatmul.mubr.f32.gmra.mxu0 %v797
        %v1169 = vpop.f32.mrf.mxu0
        %v1170 = vadd.f32 %v916, %v1169
        %v1171 = vpop.f32.mrf.mxu0
        %1172 = vmatprep.mubr.f32.mxu0 %v800
        %1173 = vmatmul.mubr.f32.gmra.mxu0 %v799
        %v1174 = vpop.f32.mrf.mxu0
        %v1175 = vadd.f32 %v916, %v1174
        %v1176 = vpop.f32.mrf.mxu0
        %1177 = vmatprep.mubr.f32.mxu0 %v802
        %1178 = vmatmul.mubr.f32.gmra.mxu0 %v801
        %v1179 = vpop.f32.mrf.mxu0
        %v1180 = vadd.f32 %v916, %v1179
        %v1181 = vpop.f32.mrf.mxu0
        %1182 = vmatprep.mubr.f32.mxu0 %v804
        %1183 = vmatmul.mubr.f32.gmra.mxu0 %v803
        %v1184 = vpop.f32.mrf.mxu0
        %v1185 = vadd.f32 %v916, %v1184
        %v1186 = vpop.f32.mrf.mxu0
        %1187 = vmatprep.mubr.f32.mxu0 %v806
        %1188 = vmatmul.mubr.f32.gmra.mxu0 %v805
        %v1189 = vpop.f32.mrf.mxu0
        %v1190 = vadd.f32 %v916, %v1189
        %v1191 = vpop.f32.mrf.mxu0
        %1192 = vdwg.mxu0
        %1193 = vst [vmem:[%s330] sm:$0xff] %v987
        %1194 = vst [vmem:[%s330 + $0x8] sm:$0xff] %v989
        %1195 = vst [vmem:[%s330 + $0x10] sm:$0xff] %v1130
        %1196 = vst [vmem:[%s330 + $0x18] sm:$0xff] %v993
        %1197 = vst [vmem:[%s330 + $0x20] sm:$0xff] %v995
        %1198 = vst [vmem:[%s330 + $0x28] sm:$0xff] %v1135
        %1199 = vst [vmem:[%s330 + $0x30] sm:$0xff] %v999
        %1200 = vst [vmem:[%s330 + $0x38] sm:$0xff] %v1001
        %1201 = vst [vmem:[%s330 + $0x40] sm:$0xff] %v1140
        %1202 = vst [vmem:[%s330 + $0x48] sm:$0xff] %v1005
        %1203 = vst [vmem:[%s330 + $0x50] sm:$0xff] %v1007
        %1204 = vst [vmem:[%s330 + $0x58] sm:$0xff] %v1145
        %1205 = vst [vmem:[%s330 + $0x60] sm:$0xff] %v1011
        %1206 = vst [vmem:[%s330 + $0x68] sm:$0xff] %v1013
        %1207 = vst [vmem:[%s330 + $0x70] sm:$0xff] %v1150
        %1208 = vst [vmem:[%s330 + $0x78] sm:$0xff] %v1017
        %1209 = vst [vmem:[%s330 + $0x80] sm:$0xff] %v1019
        %1210 = vst [vmem:[%s330 + $0x88] sm:$0xff] %v1155
        %1211 = vst [vmem:[%s330 + $0x90] sm:$0xff] %v1023
        %1212 = vst [vmem:[%s330 + $0x98] sm:$0xff] %v1025
        %1213 = vst [vmem:[%s330 + $0xa0] sm:$0xff] %v1160
        %1214 = vst [vmem:[%s330 + $0xa8] sm:$0xff] %v1029
        %1215 = vst [vmem:[%s330 + $0xb0] sm:$0xff] %v1031
        %1216 = vst [vmem:[%s330 + $0xb8] sm:$0xff] %v1165
        %1217 = vst [vmem:[%s330 + $0xc0] sm:$0xff] %v1035
        %1218 = vst [vmem:[%s330 + $0xc8] sm:$0xff] %v1037
        %1219 = vst [vmem:[%s330 + $0xd0] sm:$0xff] %v1170
        %1220 = vst [vmem:[%s330 + $0xd8] sm:$0xff] %v1041
        %1221 = vst [vmem:[%s330 + $0xe0] sm:$0xff] %v1043
        %1222 = vst [vmem:[%s330 + $0xe8] sm:$0xff] %v1175
        %1223 = vst [vmem:[%s330 + $0xf0] sm:$0xff] %v1047
        %1224 = vst [vmem:[%s330 + $0xf8] sm:$0xff] %v1049
        %1225 = vst [vmem:[%s330 + $0x100] sm:$0xff] %v1180
        %1226 = vst [vmem:[%s330 + $0x108] sm:$0xff] %v1053
        %1227 = vst [vmem:[%s330 + $0x110] sm:$0xff] %v1055
        %1228 = vst [vmem:[%s330 + $0x118] sm:$0xff] %v1185
        %1229 = vst [vmem:[%s330 + $0x120] sm:$0xff] %v1059
        %1230 = vst [vmem:[%s330 + $0x128] sm:$0xff] %v1061
        %1231 = vst [vmem:[%s330 + $0x130] sm:$0xff] %v1190
        %s1232 = sand.u32 %s163, 1
        %s1233 = scalar_lea.sflag [#allocation4], %s1232
        %s1234 = sand.u32 %s163, 1
        %s1235 = smul.addr %s1234, 312
        %s1236 = scalar_lea.vmem [#allocation9], %s1235
        // Predicated region
        $region57: #{tpu_custom_call.1} parent=39 // pred_check
          %p1237 = pneg %p173
        $region58: #{tpu_custom_call.1} parent=39 // pred_check_branch
          %1239 = sbr.rel (%p1237) target = $region60
        $region59: #{tpu_custom_call.1} parent=39 // pred_region
          %s1240 = smul.u32 13, %s26
          %s1241 = smul.u32 3, %s25
          %s1243 = ssub.s32 4992, 4992
          %1244 = vsyncadd %s1233, %s1243
          %s1245 = smul.addr %s1240, 15
          %s1246 = sadd.s32 %s1241, %s1245
          %s1247 = smul.addr %s1246, 128
          %s1248 = scalar_lea.hbm %s5, %s1247
          %s1249 = sshll.u32 %s1236, 4
          %s1250 = int_to_ptr.vmem [resolvable:$true] %s1249
          %1255 = dma.vmem_to_hbm [thread:$0]  %s1250, 4992, %s1248, %s1233, 384, 1920, 24
        $region60: #{tpu_custom_call.1} parent=39 // pred_fallthru
          _
      $region40: #{tpu_custom_call.1} parent=5 // pred_fallthru
        _
      %p1256 = scmp.le.s32.totalorder 2, %s16
      // Predicated region
      $region61: #{tpu_custom_call.1} parent=5 // pred_check
        %p1257 = pneg %p1256
      $region62: #{tpu_custom_call.1} parent=5 // pred_check_branch
        %1259 = sbr.rel (%p1257) target = $region64
      $region63: #{tpu_custom_call.1} parent=5 // pred_region
        %s1260 = ssub.s32 %s16, 2
        // Predicated region
        $region65: #{tpu_custom_call.1} parent=63 // pred_check
          %p1261 = pneg %p179
        $region66: #{tpu_custom_call.1} parent=63 // pred_check_branch
          %1263 = sbr.rel (%p1261) target = $region68
        $region67: #{tpu_custom_call.1} parent=63 // pred_region
          %s1264 = sand.u32 %s164, 1
          %s1265 = scalar_lea.sflag [#allocation4], %s1264
          %s1266 = sand.u32 %s164, 1
          %s1267 = smul.addr %s1266, 312
          %s1268 = scalar_lea.vmem [#allocation9], %s1267
          %1269 = dma.done %s1265, 4992
        $region68: #{tpu_custom_call.1} parent=63 // pred_fallthru
          _
      $region64: #{tpu_custom_call.1} parent=5 // pred_fallthru
        _
    $region6: #{tpu_custom_call.1} parent=1 // loop_footer
      %s20 = sadd.s32 1, %s16
    $region7: #{tpu_custom_call.1} parent=1 // loop_footer_branch
      %15 = sbr.rel target = $region3
    $region8: #{tpu_custom_call.1} parent=1 // loop_exit
      _
    %1270 = vsyncpa [#allocation3], 1
    %s1271 = scalar_lea.sflag [#allocation3], 1
    %1272 = vsyncpa %s1271, 1
    %1273 = vsyncpa [#allocation6], 1
    %1274 = vsyncpa [#allocation4], 1
    %s1275 = scalar_lea.sflag [#allocation4], 1
    %1276 = vsyncpa %s1275, 1

</llo_original>
